<compile_context>
chip_gen: v5e
topology: v5e:2x2
jax: 0.10.0
libtpu: 0.0.40
codegen_flags: <defaults>
</compile_context>

<pallas_src>
import functools

import jax
import jax.numpy as jnp
from jax.experimental import pallas as pl
from jax.experimental.pallas import tpu as pltpu

LANES = 128
SUB_ROWS = 8                 # one f32 vreg = (8, 128)
MAX_BLOCK_ROWS = 4096        # 4096*128*4 B = 2 MiB per input block (f32)


def _dice_kernel(t_ref, x_ref, o_ref, *, n_valid, block_rows, nb_per,
                 needs_mask):
    """Accumulate element-wise partials of sigmoid(x)*t and sigmoid(x)+t.

    o_ref block: (1, 2, SUB_ROWS, LANES) f32
      [0, 0] : running partial of sigmoid(x) * t
      [0, 1] : running partial of sigmoid(x) + t
    The scalar reduction and the dice formula happen in the JAX wrapper.
    """
    p_idx = pl.program_id(0)          # parallel slice (TensorCore split)
    j = pl.program_id(1)              # sequential reduction over row-blocks

    @pl.when(j == 0)
    def _():
        o_ref[...] = jnp.zeros_like(o_ref)

    n_sub = block_rows // SUB_ROWS
    logical_block = p_idx * nb_per + j
    block_base = logical_block * (block_rows * LANES)

    if needs_mask:
        # hoisted once per grid step: local element index within a sub-chunk
        sub_iota = (jax.lax.broadcasted_iota(jnp.int32, (SUB_ROWS, LANES), 0)
                    * LANES
                    + jax.lax.broadcasted_iota(jnp.int32, (SUB_ROWS, LANES), 1))

    def body(s, carry):
        num_acc, den_acc = carry
        r0 = pl.multiple_of(s * SUB_ROWS, SUB_ROWS)
        x = x_ref[pl.ds(r0, SUB_ROWS), :].astype(jnp.float32)
        t = t_ref[pl.ds(r0, SUB_ROWS), :].astype(jnp.float32)
        # sigmoid(x) = 0.5 * (1 + tanh(x/2)): single EUP op instead of exp+div.
        p = 0.5 * (1.0 + jnp.tanh(0.5 * x))
        num = p * t
        den = p + t
        if needs_mask:
            idx = block_base + s * (SUB_ROWS * LANES) + sub_iota
            valid = idx < n_valid
            num = jnp.where(valid, num, 0.0)
            den = jnp.where(valid, den, 0.0)
        return num_acc + num, den_acc + den

    zero = jnp.zeros((SUB_ROWS, LANES), jnp.float32)
    num, den = jax.lax.fori_loop(0, n_sub, body, (zero, zero),
                                 unroll=min(8, n_sub))

    # Partials stayed in vregs above; one small VMEM RMW per grid step.
    o_ref[0, 0] += num
    o_ref[0, 1] += den


def dice_loss(targets, inputs, smooth=1.0):
    """JAX/Pallas equivalent of DiceLoss.forward(targets, inputs, smooth)."""
    t_flat = targets.reshape(-1)          # keep original dtype; kernel casts
    x_flat = inputs.reshape(-1)
    n = int(t_flat.shape[0])

    rows = -(-n // LANES)
    block_rows = min(MAX_BLOCK_ROWS, -(-rows // SUB_ROWS) * SUB_ROWS)
    rows_p = -(-rows // block_rows) * block_rows
    n_padded = rows_p * LANES
    if n_padded != n:
        # TODO(synk): a ragged-tail path would avoid this full-array copy for
        # non-tile-aligned inputs; pad values are ignored via in-kernel masking.
        t_flat = jnp.pad(t_flat, (0, n_padded - n))
        x_flat = jnp.pad(x_flat, (0, n_padded - n))

    t2 = t_flat.reshape(rows_p, LANES)
    x2 = x_flat.reshape(rows_p, LANES)

    n_blocks = rows_p // block_rows
    n_slices = 2 if n_blocks >= 2 else 1   # leading parallel axis (v7x: 2 TCs)
    nb_per = -(-n_blocks // n_slices)
    # Mask only needed if there is pad or if a slice re-reads a clamped block.
    needs_mask = (n_padded != n) or (nb_per * n_slices != n_blocks)

    def in_map(p, j):
        return (jnp.minimum(p * nb_per + j, n_blocks - 1), 0)

    out = pl.pallas_call(
        functools.partial(_dice_kernel, n_valid=n, block_rows=block_rows,
                          nb_per=nb_per, needs_mask=needs_mask),
        out_shape=jax.ShapeDtypeStruct((n_slices, 2, SUB_ROWS, LANES),
                                       jnp.float32),
        grid_spec=pltpu.PrefetchScalarGridSpec(
            num_scalar_prefetch=0,
            grid=(n_slices, nb_per),
            in_specs=[
                pl.BlockSpec((block_rows, LANES), in_map),
                pl.BlockSpec((block_rows, LANES), in_map),
            ],
            out_specs=pl.BlockSpec((1, 2, SUB_ROWS, LANES),
                                   lambda p, j: (p, 0, 0, 0)),
        ),
        compiler_params=pltpu.CompilerParams(
            dimension_semantics=("parallel", "arbitrary"),
            vmem_limit_bytes=32 * 1024 * 1024,
        ),
    )(t2, x2)

    num = jnp.sum(out[:, 0])
    den = jnp.sum(out[:, 1])
    dice = (2.0 * num + smooth) / (den + smooth)
    return 1.0 - dice


def _dice_loss_ref(targets, inputs, smooth=1.0):
    p = jax.nn.sigmoid(inputs.astype(jnp.float32)).reshape(-1)
    t = targets.astype(jnp.float32).reshape(-1)
    inter = jnp.sum(p * t)
    dice = (2.0 * inter + smooth) / (jnp.sum(p) + jnp.sum(t) + smooth)
    return 1.0 - dice


if __name__ == "__main__":
    key = jax.random.PRNGKey(0)
    k1, k2 = jax.random.split(key)
    # NCHW: batch=2, channels=4, spatial=16x16
    shape = (2, 4, 16, 16)
    inputs = jax.random.normal(k1, shape, dtype=jnp.float32)               # logits
    targets = (jax.random.uniform(k2, shape) > 0.5).astype(jnp.float32)    # mask

    loss = jax.block_until_ready(dice_loss(targets, inputs, smooth=1.0))
    ref = jax.block_until_ready(_dice_loss_ref(targets, inputs, smooth=1.0))

    assert jnp.allclose(loss, ref, atol=5e-5, rtol=5e-5), (loss, ref)
    print("KERNEL_OK")
</pallas_src>

<mosaic_0001>
module attributes {stable_mosaic.version = 11 : i64} {
  func.func @_dice_kernel(%arg0: i32, %arg1: i32, %arg2: memref<16x128xf32, #tpu.memory_space<vmem>>, %arg3: memref<16x128xf32, #tpu.memory_space<vmem>>, %arg4: memref<1x2x8x128xf32, #tpu.memory_space<vmem>>) attributes {dimension_semantics = [#tpu.dimension_semantics<parallel>, #tpu.dimension_semantics<arbitrary>], iteration_bounds = array<i64: 1, 1>, scalar_prefetch = 0 : i64, scratch_operands = 0 : i64, tpu.core_type = #tpu.core_type<tc>, window_params = [{transform_indices = @transform_0, window_bounds = array<i64: 16, 128>}, {transform_indices = @transform_1, window_bounds = array<i64: 16, 128>}, {transform_indices = @transform_2, window_bounds = array<i64: 1, 2, 8, 128>}]} {
    %c0_i32 = arith.constant 0 : i32
    %0 = arith.cmpi eq, %arg1, %c0_i32 : i32
    %1 = arith.extui %0 : i1 to i32
    %c0_i32_0 = arith.constant 0 : i32
    %2 = arith.cmpi ne, %1, %c0_i32_0 : i32
    scf.if %2 {
      %cst_27 = arith.constant 0.000000e+00 : f32
      %50 = vector.broadcast %cst_27 : f32 to vector<1x2x8x128xf32>
      %c0_28 = arith.constant 0 : index
      %c0_29 = arith.constant 0 : index
      %c0_30 = arith.constant 0 : index
      %c0_31 = arith.constant 0 : index
      %51 = vector.load %arg4[%c0_28, %c0_29, %c0_30, %c0_31] : memref<1x2x8x128xf32, #tpu.memory_space<vmem>>, vector<1x2x8x128xf32>
      tpu.vector_store %arg4[%c0_28, %c0_29, %c0_30, %c0_31], %50 {strides = array<i32>} : memref<1x2x8x128xf32, #tpu.memory_space<vmem>>, vector<1x2x8x128xf32>,
    } else {
    }
    %cst = arith.constant 0.000000e+00 : f32
    %3 = vector.broadcast %cst : f32 to vector<8x128xf32>
    %c0_i32_1 = arith.constant 0 : i32
    %c8_i32 = arith.constant 8 : i32
    %4 = arith.muli %c0_i32_1, %c8_i32 : i32
    %5 = tpu.assume_multiple %4, 8 : i32
    %6 = arith.index_cast %5 : i32 to index
    %c0 = arith.constant 0 : index
    %7 = vector.load %arg3[%6, %c0] : memref<16x128xf32, #tpu.memory_space<vmem>>, vector<8x128xf32>
    %8 = arith.index_cast %5 : i32 to index
    %c0_2 = arith.constant 0 : index
    %9 = vector.load %arg2[%8, %c0_2] : memref<16x128xf32, #tpu.memory_space<vmem>>, vector<8x128xf32>
    %cst_3 = arith.constant 5.000000e-01 : f32
    %10 = vector.broadcast %cst_3 : f32 to vector<8x128xf32>
    %11 = arith.mulf %10, %7 : vector<8x128xf32>
    %12 = math.tanh %11 : vector<8x128xf32>
    %cst_4 = arith.constant 1.000000e+00 : f32
    %13 = vector.broadcast %cst_4 : f32 to vector<8x128xf32>
    %14 = arith.addf %13, %12 : vector<8x128xf32>
    %cst_5 = arith.constant 5.000000e-01 : f32
    %15 = vector.broadcast %cst_5 : f32 to vector<8x128xf32>
    %16 = arith.mulf %15, %14 : vector<8x128xf32>
    %17 = arith.mulf %16, %9 : vector<8x128xf32>
    %18 = arith.addf %16, %9 : vector<8x128xf32>
    %19 = arith.addf %3, %17 : vector<8x128xf32>
    %20 = arith.addf %3, %18 : vector<8x128xf32>
    %c1_i32 = arith.constant 1 : i32
    %c8_i32_6 = arith.constant 8 : i32
    %21 = arith.muli %c1_i32, %c8_i32_6 : i32
    %22 = tpu.assume_multiple %21, 8 : i32
    %23 = arith.index_cast %22 : i32 to index
    %c0_7 = arith.constant 0 : index
    %24 = vector.load %arg3[%23, %c0_7] : memref<16x128xf32, #tpu.memory_space<vmem>>, vector<8x128xf32>
    %25 = arith.index_cast %22 : i32 to index
    %c0_8 = arith.constant 0 : index
    %26 = vector.load %arg2[%25, %c0_8] : memref<16x128xf32, #tpu.memory_space<vmem>>, vector<8x128xf32>
    %cst_9 = arith.constant 5.000000e-01 : f32
    %27 = vector.broadcast %cst_9 : f32 to vector<8x128xf32>
    %28 = arith.mulf %27, %24 : vector<8x128xf32>
    %29 = math.tanh %28 : vector<8x128xf32>
    %cst_10 = arith.constant 1.000000e+00 : f32
    %30 = vector.broadcast %cst_10 : f32 to vector<8x128xf32>
    %31 = arith.addf %30, %29 : vector<8x128xf32>
    %cst_11 = arith.constant 5.000000e-01 : f32
    %32 = vector.broadcast %cst_11 : f32 to vector<8x128xf32>
    %33 = arith.mulf %32, %31 : vector<8x128xf32>
    %34 = arith.mulf %33, %26 : vector<8x128xf32>
    %35 = arith.addf %33, %26 : vector<8x128xf32>
    %36 = arith.addf %19, %34 : vector<8x128xf32>
    %37 = arith.addf %20, %35 : vector<8x128xf32>
    %c2_i32 = arith.constant 2 : i32
    %c0_12 = arith.constant 0 : index
    %c0_13 = arith.constant 0 : index
    %c0_14 = arith.constant 0 : index
    %c0_15 = arith.constant 0 : index
    %38 = vector.load %arg4[%c0_12, %c0_13, %c0_14, %c0_15] : memref<1x2x8x128xf32, #tpu.memory_space<vmem>>, vector<1x1x8x128xf32>
    %39 = vector.shape_cast %38 : vector<1x1x8x128xf32> to vector<8x128xf32>
    %40 = arith.addf %39, %36 : vector<8x128xf32>
    %c0_16 = arith.constant 0 : index
    %c0_17 = arith.constant 0 : index
    %c0_18 = arith.constant 0 : index
    %c0_19 = arith.constant 0 : index
    %41 = vector.load %arg4[%c0_16, %c0_17, %c0_18, %c0_19] : memref<1x2x8x128xf32, #tpu.memory_space<vmem>>, vector<1x1x8x128xf32>
    %42 = vector.shape_cast %41 : vector<1x1x8x128xf32> to vector<8x128xf32>
    %43 = vector.shape_cast %40 : vector<8x128xf32> to vector<1x1x8x128xf32>
    tpu.vector_store %arg4[%c0_16, %c0_17, %c0_18, %c0_19], %43 {strides = array<i32>} : memref<1x2x8x128xf32, #tpu.memory_space<vmem>>, vector<1x1x8x128xf32>,
    %c0_20 = arith.constant 0 : index
    %c1 = arith.constant 1 : index
    %c0_21 = arith.constant 0 : index
    %c0_22 = arith.constant 0 : index
    %44 = vector.load %arg4[%c0_20, %c1, %c0_21, %c0_22] : memref<1x2x8x128xf32, #tpu.memory_space<vmem>>, vector<1x1x8x128xf32>
    %45 = vector.shape_cast %44 : vector<1x1x8x128xf32> to vector<8x128xf32>
    %46 = arith.addf %45, %37 : vector<8x128xf32>
    %c0_23 = arith.constant 0 : index
    %c1_24 = arith.constant 1 : index
    %c0_25 = arith.constant 0 : index
    %c0_26 = arith.constant 0 : index
    %47 = vector.load %arg4[%c0_23, %c1_24, %c0_25, %c0_26] : memref<1x2x8x128xf32, #tpu.memory_space<vmem>>, vector<1x1x8x128xf32>
    %48 = vector.shape_cast %47 : vector<1x1x8x128xf32> to vector<8x128xf32>
    %49 = vector.shape_cast %46 : vector<8x128xf32> to vector<1x1x8x128xf32>
    tpu.vector_store %arg4[%c0_23, %c1_24, %c0_25, %c0_26], %49 {strides = array<i32>} : memref<1x2x8x128xf32, #tpu.memory_space<vmem>>, vector<1x1x8x128xf32>,
    return
  }
  func.func @transform_0(%arg0: i32, %arg1: i32) -> (i32, i32) {
    %c1_i32 = arith.constant 1 : i32
    %0 = arith.muli %arg0, %c1_i32 : i32
    %1 = arith.addi %0, %arg1 : i32
    %c0_i32 = arith.constant 0 : i32
    %2 = arith.minsi %1, %c0_i32 : i32
    %c0_i32_0 = arith.constant 0 : i32
    %c0_i32_1 = arith.constant 0 : i32
    return %2, %c0_i32_0 : i32, i32
  }
  func.func @transform_1(%arg0: i32, %arg1: i32) -> (i32, i32) {
    %c1_i32 = arith.constant 1 : i32
    %0 = arith.muli %arg0, %c1_i32 : i32
    %1 = arith.addi %0, %arg1 : i32
    %c0_i32 = arith.constant 0 : i32
    %2 = arith.minsi %1, %c0_i32 : i32
    %c0_i32_0 = arith.constant 0 : i32
    %c0_i32_1 = arith.constant 0 : i32
    return %2, %c0_i32_0 : i32, i32
  }
  func.func @transform_2(%arg0: i32, %arg1: i32) -> (i32, i32, i32, i32) {
    %c0_i32 = arith.constant 0 : i32
    %c0_i32_0 = arith.constant 0 : i32
    %c0_i32_1 = arith.constant 0 : i32
    %c0_i32_2 = arith.constant 0 : i32
    return %arg0, %c0_i32, %c0_i32_0, %c0_i32_1 : i32, i32, i32, i32
  }
}

</mosaic_0001>

<llo_original>
// kernel: tpu_custom_call.1
$region0: #{tpu_custom_call.1}
  #allocation0 [shape = 'u32[]', space=smem, size = 0x4, offset = 0x4, fixed_abs, tag = 'smem constant byte address 0x4 - core index']
  #allocation1 [shape = 'u32[72,128]{1,0:T(1,128)}', space=vmem, size = 0x9000, scoped, tag = 'internal scratch']
  %s0 = inlined_call_operand.hbm [shape: f32[16,128], index: 0, kind: input, shape index: {}]
  %s1 = inlined_call_operand.hbm [shape: f32[16,128], index: 1, kind: input, shape index: {}]
  %s2 = inlined_call_operand.hbm [shape: f32[1,2,8,128], index: 2, kind: output, shape index: {}]
  %s3 = sld [smem:[#allocation0]]
  $region30: #{tpu_custom_call.1} parent=0
    _
  %s5 = ssub.s32 1, %s3
  %s6 = scalar_select 0, %s5, %s3
  $region1: #{tpu_custom_call.1} parent=0
    #allocation2 [shape = 'u8[8192]{0}', space=vmem, size = 0x2000, scoped, tag = 'input window, operand 0, single buffered']
    #allocation3 [shape = 's32[1]{0}', space=sflag, size = 0x4, scoped, tag = 'scoped memory for tpu_custom_call.1']
    #allocation4 [shape = 's32[1]{0}', space=sflag, size = 0x4, scoped, tag = 'scoped memory for tpu_custom_call.1']
    #allocation5 [shape = 'u8[8192]{0}', space=vmem, size = 0x2000, scoped, tag = 'input window, operand 1, single buffered']
    #allocation6 [shape = 's32[1]{0}', space=sflag, size = 0x4, scoped, tag = 'scoped memory for tpu_custom_call.1']
    #allocation7 [shape = 'u8[8192]{0}', space=vmem, size = 0x2000, scoped, tag = 'output window, operand 0, single buffered']
    %7 = vsyncpa [#allocation3], 0
    %8 = vsyncpa [#allocation6], 0
    %9 = vsyncpa [#allocation4], 0
    // Predicated region
    $region2: #{tpu_custom_call.1} parent=1 // pred_check
      _
    $region3: #{tpu_custom_call.1} parent=1 // pred_check_branch
      %11 = sbr.rel (0) target = $region5
    $region4: #{tpu_custom_call.1} parent=1 // pred_region
      %s12 = sadd.s32 0, 0
      %p13 = scmp.lt.s32.totalorder %s12, 0
      %s14 = scalar_select %p13, %s12, 0
      %s15 = smul.u32 2, %s14
      %17 = vsyncadd [#allocation3], 0
      %s18 = smul.addr %s15, 8
      %s19 = scalar_lea.hbm %s0, %s18
      %s20 = sshll.u32 %s19, 4
      %s21 = int_to_ptr.hbm [resolvable:$true] %s20
      %s22 = sshll.u32 [#allocation2], 4
      %s23 = int_to_ptr.vmem [resolvable:$true] %s22
      %28 = dma.hbm_to_vmem [thread:$0]  %s21, 256, %s23, [#allocation3], 128, 128, 8
    $region5: #{tpu_custom_call.1} parent=1 // pred_fallthru
      _
    // Predicated region
    $region6: #{tpu_custom_call.1} parent=1 // pred_check
      _
    $region7: #{tpu_custom_call.1} parent=1 // pred_check_branch
      %30 = sbr.rel (0) target = $region9
    $region8: #{tpu_custom_call.1} parent=1 // pred_region
      %s31 = sadd.s32 0, 0
      %p32 = scmp.lt.s32.totalorder %s31, 0
      %s33 = scalar_select %p32, %s31, 0
      %s34 = smul.u32 2, %s33
      %36 = vsyncadd [#allocation6], 0
      %s37 = smul.addr %s34, 8
      %s38 = scalar_lea.hbm %s1, %s37
      %s39 = sshll.u32 %s38, 4
      %s40 = int_to_ptr.hbm [resolvable:$true] %s39
      %s41 = sshll.u32 [#allocation5], 4
      %s42 = int_to_ptr.vmem [resolvable:$true] %s41
      %47 = dma.hbm_to_vmem [thread:$0]  %s40, 256, %s42, [#allocation6], 128, 128, 8
    $region9: #{tpu_custom_call.1} parent=1 // pred_fallthru
      _
    // Predicated region
    $region10: #{tpu_custom_call.1} parent=1 // pred_check
      _
    $region11: #{tpu_custom_call.1} parent=1 // pred_check_branch
      %49 = sbr.rel (0) target = $region13
    $region12: #{tpu_custom_call.1} parent=1 // pred_region
      %51 = dma.done [#allocation3], 256
    $region13: #{tpu_custom_call.1} parent=1 // pred_fallthru
      _
    // Predicated region
    $region14: #{tpu_custom_call.1} parent=1 // pred_check
      _
    $region15: #{tpu_custom_call.1} parent=1 // pred_check_branch
      %53 = sbr.rel (0) target = $region17
    $region16: #{tpu_custom_call.1} parent=1 // pred_region
      %55 = dma.done [#allocation6], 256
    $region17: #{tpu_custom_call.1} parent=1 // pred_fallthru
      _
    %s56 = sadd.s32 0, 0
    %p57 = scmp.lt.s32.totalorder %s56, 0
    %s58 = scalar_select %p57, %s56, 0
    %s59 = smul.u32 2, %s58
    %s60 = sadd.s32 0, 0
    %p61 = scmp.lt.s32.totalorder %s60, 0
    %s62 = scalar_select %p61, %s60, 0
    %s63 = smul.u32 2, %s62
    %p64 = scmp.eq.s32.totalorder 0, 0
    // Predicated region
    $region18: #{tpu_custom_call.1} parent=1 // pred_check
      %p65 = pneg %p64
    $region19: #{tpu_custom_call.1} parent=1 // pred_check_branch
      %67 = sbr.rel (%p65) target = $region21
    $region20: #{tpu_custom_call.1} parent=1 // pred_region
      %68 = vst [vmem:[#allocation7] sm:$0xff] 0.0
      %69 = vst [vmem:[#allocation7 + $0x8] sm:$0xff] 0.0
    $region21: #{tpu_custom_call.1} parent=1 // pred_fallthru
      _
    %v70 = vld [vmem:[#allocation5] sm:$0xff]
    %v71 = vld [vmem:[#allocation2] sm:$0xff]
    %v72 = vmul.f32 %v70, 0.5
    %v73 = vtanh.pop %v72
    %v74 = vadd.f32 %v73, 1.0
    %v75 = vmul.f32 %v74, 0.5
    %v76 = vmul.f32 %v75, %v71
    %v77 = vadd.f32 %v75, %v71
    %v78 = vadd.f32 %v76, 0.0
    %v79 = vadd.f32 %v77, 0.0
    %s80 = scalar_lea.vmem [#allocation5], 8
    %v81 = vld [vmem:[%s80] sm:$0xff]
    %s82 = scalar_lea.vmem [#allocation2], 8
    %v83 = vld [vmem:[%s82] sm:$0xff]
    %v84 = vmul.f32 %v81, 0.5
    %v85 = vtanh.pop %v84
    %v86 = vadd.f32 %v85, 1.0
    %v87 = vmul.f32 %v86, 0.5
    %v88 = vmul.f32 %v87, %v83
    %v89 = vadd.f32 %v87, %v83
    %v90 = vadd.f32 %v78, %v88
    %v91 = vadd.f32 %v79, %v89
    %v92 = vld [vmem:[#allocation7] sm:$0xff]
    %v93 = vadd.f32 %v92, %v90
    %94 = vst [vmem:[#allocation7] sm:$0xff] %v93
    %s95 = scalar_lea.vmem [#allocation7], 8
    %v96 = vld [vmem:[%s95] sm:$0xff]
    %v97 = vadd.f32 %v96, %v91
    %98 = vst [vmem:[%s95] sm:$0xff] %v97
    // Predicated region
    $region22: #{tpu_custom_call.1} parent=1 // pred_check
      _
    $region23: #{tpu_custom_call.1} parent=1 // pred_check_branch
      %100 = sbr.rel (0) target = $region25
    $region24: #{tpu_custom_call.1} parent=1 // pred_region
      %102 = vsyncadd [#allocation4], 0
      %s103 = sshll.u32 [#allocation7], 4
      %s104 = int_to_ptr.vmem [resolvable:$true] %s103
      %s105 = sshll.u32 %s2, 4
      %s106 = int_to_ptr.hbm [resolvable:$true] %s105
      %111 = dma.vmem_to_hbm [thread:$0]  %s104, 256, %s106, [#allocation4], 128, 128, 8
    $region25: #{tpu_custom_call.1} parent=1 // pred_fallthru
      _
    // Predicated region
    $region26: #{tpu_custom_call.1} parent=1 // pred_check
      _
    $region27: #{tpu_custom_call.1} parent=1 // pred_check_branch
      %113 = sbr.rel (0) target = $region29
    $region28: #{tpu_custom_call.1} parent=1 // pred_region
      %115 = dma.done [#allocation4], 256
    $region29: #{tpu_custom_call.1} parent=1 // pred_fallthru
      _
    %116 = vsyncpa [#allocation3], 1
    %117 = vsyncpa [#allocation6], 1
    %118 = vsyncpa [#allocation4], 1

</llo_original>
